<compile_context>
chip_gen: v6e
topology: v6e:2x2x1
jax: 0.10.0
libtpu: 0.0.40
codegen_flags: <defaults>
</compile_context>

<pallas_src>
import functools

import jax
import jax.numpy as jnp
from jax.experimental import pallas as pl
from jax.experimental.pallas import tpu as pltpu


# ----------------------------------------------------------------------------
# Fused per-batch kernel: dist_qhvw + KL + gumbel-softmax expectation
# ----------------------------------------------------------------------------
def _lower_bound_kernel(onehot_ref, v_ref, pk_ref, attc_ref, attq_ref, vd_ref,
                        ohcT_ref, ohqT_ref, wr_ref, wms_ref, wpiT_ref,
                        part_ref, *, inv_temp, e2, lat, k):
    onehot = onehot_ref[0]                      # (S, V)   bf16 (exact 0/1)
    v = v_ref[0]                                # (S, E2)  f32
    pk = pk_ref[0]                              # (S, 3L+K) f32 packed input

    mu_p = pk[:, :lat]                          # (S, L)
    sigma_p = pk[:, lat:2 * lat]                # (S, L)
    eps = pk[:, 2 * lat:3 * lat]                # (S, L)
    gmb = pk[:, 3 * lat:3 * lat + k]            # (S, K)  gumbel + b_pi (bias folded)

    # ---- q(h | v, w):  r = onehot @ W_r ; lin = [v,r] @ [W_mu | W_sig] ----------
    r = jnp.dot(onehot, wr_ref[...], preferred_element_type=jnp.float32)      # (S, L)
    lin = (jnp.dot(v, wms_ref[:e2, :], preferred_element_type=jnp.float32)
           + jnp.dot(r, wms_ref[e2:, :], preferred_element_type=jnp.float32)) # (S, 2L)
    mu = jnp.tanh(lin[:, :lat])                 # (S, L)
    log_sigma = jnp.tanh(lin[:, lat:])          # log(sigma) exactly (sigma = exp(tanh))
    sigma = jnp.exp(log_sigma)

    # ---- KL( N(mu, sigma^2) || N(mu_p, sigma_p^2) ), summed over (S, L) --------
    var_q = sigma * sigma
    var_p = sigma_p * sigma_p
    diff = mu_p - mu
    kl_sum = 0.5 * jnp.sum(jnp.log(var_p) - 2.0 * log_sigma - 1.0
                           + (var_q + diff * diff) / var_p)

    # ---- per-source target mass (K = V = 128 contraction, no (S,V) mixture) ----
    # match_c[s,c] = <onehot[s,:], onehot_case[c,:]>   (1 if case token c == target s)
    match_c = jnp.dot(onehot, ohcT_ref[0], preferred_element_type=jnp.float32)  # (S, C)
    match_q = jnp.dot(onehot, ohqT_ref[0], preferred_element_type=jnp.float32)  # (S, Q)
    pc = jnp.sum(attc_ref[0] * match_c, axis=1, keepdims=True)                  # (S, 1)
    pq = jnp.sum(attq_ref[0] * match_q, axis=1, keepdims=True)                  # (S, 1)
    pvd = jnp.sum(vd_ref[0] * onehot.astype(jnp.float32), axis=1, keepdims=True)

    # ---- reparameterized sample -> gumbel-softmax source weights ----------------
    # softmax((gumbel + log_softmax(logits))/tau) == softmax((gumbel + logits)/tau)
    latent = mu + sigma * eps                   # (S, L)
    wpi = wpiT_ref[...]                         # (K, L)
    z = []
    for j in range(k):                          # K == 3 (reference asserts this)
        lj = jnp.sum(latent * wpi[j:j + 1, :], axis=1, keepdims=True)           # (S, 1)
        z.append((lj + gmb[:, j:j + 1]) * inv_temp)
    m = jnp.maximum(jnp.maximum(z[0], z[1]), z[2])
    ew0 = jnp.exp(z[0] - m)
    ew1 = jnp.exp(z[1] - m)
    ew2 = jnp.exp(z[2] - m)
    # mixture ordering matches the reference stack: [questions, cases, vocab_dist]
    num = ew0 * pq + ew1 * pc + ew2 * pvd       # (S, 1) unnormalized p_theta
    den = ew0 + ew1 + ew2
    log_p_theta = jnp.log(num) - jnp.log(den)   # (S, 1)

    # per-batch partial:  sum_s log p_theta - sum_{s,l} kl
    part = jnp.sum(log_p_theta) - kl_sum
    part_ref[...] = jnp.full(part_ref.shape, part, dtype=jnp.float32)


# ----------------------------------------------------------------------------
# forward(): host-side layout plumbing around the fused per-batch kernel
# ----------------------------------------------------------------------------
def lower_bound_loss(params, h, v, onehot, mu_p, sigma_p,
                     att_c, att_q, vocab_dist, onehot_case, onehot_q,
                     eps, gumbel, num_step, temperature_initial=1.0):
    del h  # only h.shape[2] (latent_dim) is used by the reference; encoded in params
    B, S, V = onehot.shape
    E2 = v.shape[2]
    L = params["w_r"].shape[1]
    K = params["w_pi"].shape[1]
    C = att_c.shape[1]
    Q = att_q.shape[1]
    assert K == 3  # mirrors the reference's assert on num_dist_word_selected

    # ---- host-side layout plumbing (fewer, wider, lane-dense inputs) -----------
    w_musig = jnp.concatenate([params["w_mu"], params["w_sig"]], axis=1)  # (E2+L, 2L)
    w_piT = params["w_pi"].T                                              # (K, L)
    w_r_bf = params["w_r"].astype(jnp.bfloat16)
    gumbel_b = gumbel + params["b_pi"].reshape(1, 1, K)                   # fold pi bias
    packed = jnp.concatenate([mu_p, sigma_p, eps, gumbel_b], axis=2)      # (B,S,3L+K)
    onehot_bf = onehot.astype(jnp.bfloat16)                               # exact
    ohcT = jnp.swapaxes(onehot_case, 1, 2).astype(jnp.bfloat16)           # (B, V, C)
    ohqT = jnp.swapaxes(onehot_q, 1, 2).astype(jnp.bfloat16)              # (B, V, Q)
    att_cT = jnp.swapaxes(att_c, 1, 2)                                    # (B, S, C)
    att_qT = jnp.swapaxes(att_q, 1, 2)                                    # (B, S, Q)

    inv_temp = float(num_step) / float(temperature_initial)

    kernel = functools.partial(_lower_bound_kernel, inv_temp=inv_temp,
                               e2=E2, lat=L, k=K)

    # One grid step per batch element; "parallel" lets Mosaic shard the batch
    # across both TensorCores on v7x and pipeline DMA against compute.
    # TODO(synk): at much larger S/V, switch the (S,V)-sized inputs to row-block
    # tiles over S and set vmem_limit_bytes explicitly.
    parts = pl.pallas_call(
        kernel,
        out_shape=jax.ShapeDtypeStruct((B, 1, 128), jnp.float32),
        grid=(B,),
        in_specs=[
            pl.BlockSpec((1, S, V), lambda b: (b, 0, 0)),           # onehot (bf16)
            pl.BlockSpec((1, S, E2), lambda b: (b, 0, 0)),          # v
            pl.BlockSpec((1, S, 3 * L + K), lambda b: (b, 0, 0)),   # mu_p|sig_p|eps|gmb
            pl.BlockSpec((1, S, C), lambda b: (b, 0, 0)),           # att_c^T
            pl.BlockSpec((1, S, Q), lambda b: (b, 0, 0)),           # att_q^T
            pl.BlockSpec((1, S, V), lambda b: (b, 0, 0)),           # vocab_dist
            pl.BlockSpec((1, V, C), lambda b: (b, 0, 0)),           # onehot_case^T (bf16)
            pl.BlockSpec((1, V, Q), lambda b: (b, 0, 0)),           # onehot_q^T (bf16)
            pl.BlockSpec((V, L), lambda b: (0, 0)),                 # w_r (bf16)
            pl.BlockSpec((E2 + L, 2 * L), lambda b: (0, 0)),        # [w_mu | w_sig]
            pl.BlockSpec((K, L), lambda b: (0, 0)),                 # w_pi^T
        ],
        out_specs=pl.BlockSpec((1, 1, 128), lambda b: (b, 0, 0)),   # lane-dense partials
        compiler_params=pltpu.CompilerParams(
            dimension_semantics=("parallel",)),
    )(onehot_bf, v, packed, att_cT, att_qT, vocab_dist,
      ohcT, ohqT, w_r_bf, w_musig, w_piT)

    # torch.mean(torch.mean(loss_unmerged, dim=1), dim=0) == mean over all B*S rows
    return jnp.sum(parts[:, 0, 0]) / (B * S)


# ----------------------------------------------------------------------------
# main
# ----------------------------------------------------------------------------
if __name__ == "__main__":
    B, S, L = 2, 8, 32          # bsz, s_len, latent_dim
    E2 = 32                     # 2 * encoder_hidden_dim
    V = 128                     # vocab_size
    C, Q = 16, 8                # case / question lengths
    K = 3                       # num_dist_word_selected
    num_step = 5
    temperature_initial = 1.0

    key = jax.random.PRNGKey(0)
    keys = jax.random.split(key, 16)

    def linear_init(k, fan_in, shape):
        bound = 1.0 / jnp.sqrt(jnp.float32(fan_in))
        return jax.random.uniform(k, shape, jnp.float32, -bound, bound)

    params = {
        "w_r":   linear_init(keys[0], V, (V, L)),             # Linear(vocab -> latent), no bias
        "w_mu":  linear_init(keys[1], E2 + L, (E2 + L, L)),   # Linear(vr -> latent), no bias
        "w_sig": linear_init(keys[2], E2 + L, (E2 + L, L)),   # Linear(vr -> latent), no bias
        "w_pi":  linear_init(keys[3], L, (L, K)),             # Linear(latent -> 3)
        "b_pi":  linear_init(keys[4], L, (1, K)),
    }

    # inputs
    h = jax.random.normal(keys[5], (B, S, L), jnp.float32)
    v = jax.random.normal(keys[6], (B, S, E2), jnp.float32)
    tgt_idx = jax.random.randint(keys[7], (B, S), 0, V)
    onehot = jax.nn.one_hot(tgt_idx, V, dtype=jnp.float32)            # [B, S, V]

    # h_dist (prior p(h|v)) as a diagonal Gaussian
    mu_p = jax.random.normal(keys[8], (B, S, L), jnp.float32)
    sigma_p = jnp.exp(0.1 * jax.random.normal(keys[9], (B, S, L), jnp.float32))

    # attention over case / question tokens per decoder step: [B, src_len, S]
    att_c = jax.nn.softmax(jax.random.normal(keys[10], (B, C, S), jnp.float32), axis=1)
    att_q = jax.nn.softmax(jax.random.normal(keys[11], (B, Q, S), jnp.float32), axis=1)
    vocab_dist = jax.nn.softmax(jax.random.normal(keys[12], (B, S, V), jnp.float32), axis=2)

    # synthetic "examples": token ids for each case / question -> one-hot maps
    case_idx = jax.random.randint(keys[13], (B, C), 0, V)
    ques_idx = jax.random.randint(keys[14], (B, Q), 0, V)
    onehot_case = jax.nn.one_hot(case_idx, V, dtype=jnp.float32)      # [B, C, V]
    onehot_q = jax.nn.one_hot(ques_idx, V, dtype=jnp.float32)         # [B, Q, V]

    # stochastic draws of the forward pass (reparameterization + gumbel-softmax)
    ek, gk = jax.random.split(keys[15])
    eps = jax.random.normal(ek, (B, S, L), jnp.float32)
    gumbel = jax.random.gumbel(gk, (B, S, K), jnp.float32)

    loss = lower_bound_loss(params, h, v, onehot, mu_p, sigma_p,
                            att_c, att_q, vocab_dist, onehot_case, onehot_q,
                            eps, gumbel, num_step, temperature_initial)
    jax.block_until_ready(loss)
    assert loss.shape == ()
    assert bool(jnp.isfinite(loss))
    print("KERNEL_OK")
</pallas_src>

<mosaic_0001>
module attributes {stable_mosaic.version = 11 : i64} {
  func.func @_lower_bound_kernel(%arg0: i32, %arg1: memref<1x8x128xbf16, #tpu.memory_space<vmem>>, %arg2: memref<1x8x32xf32, #tpu.memory_space<vmem>>, %arg3: memref<1x8x99xf32, #tpu.memory_space<vmem>>, %arg4: memref<1x8x16xf32, #tpu.memory_space<vmem>>, %arg5: memref<1x8x8xf32, #tpu.memory_space<vmem>>, %arg6: memref<1x8x128xf32, #tpu.memory_space<vmem>>, %arg7: memref<1x128x16xbf16, #tpu.memory_space<vmem>>, %arg8: memref<1x128x8xbf16, #tpu.memory_space<vmem>>, %arg9: memref<128x32xbf16, #tpu.memory_space<vmem>>, %arg10: memref<64x64xf32, #tpu.memory_space<vmem>>, %arg11: memref<3x32xf32, #tpu.memory_space<vmem>>, %arg12: memref<1x1x128xf32, #tpu.memory_space<vmem>>) attributes {dimension_semantics = [#tpu.dimension_semantics<parallel>], iteration_bounds = array<i64: 2>, scalar_prefetch = 0 : i64, scratch_operands = 0 : i64, tpu.core_type = #tpu.core_type<tc>, window_params = [{transform_indices = @transform_0, window_bounds = array<i64: 1, 8, 128>}, {transform_indices = @transform_1, window_bounds = array<i64: 1, 8, 32>}, {transform_indices = @transform_2, window_bounds = array<i64: 1, 8, 99>}, {transform_indices = @transform_3, window_bounds = array<i64: 1, 8, 16>}, {transform_indices = @transform_4, window_bounds = array<i64: 1, 8, 8>}, {transform_indices = @transform_5, window_bounds = array<i64: 1, 8, 128>}, {transform_indices = @transform_6, window_bounds = array<i64: 1, 128, 16>}, {transform_indices = @transform_7, window_bounds = array<i64: 1, 128, 8>}, {pipeline_mode = #tpu.pipeline_mode<synchronous>, transform_indices = @transform_8, window_bounds = array<i64: 128, 32>}, {pipeline_mode = #tpu.pipeline_mode<synchronous>, transform_indices = @transform_9, window_bounds = array<i64: 64, 64>}, {pipeline_mode = #tpu.pipeline_mode<synchronous>, transform_indices = @transform_10, window_bounds = array<i64: 3, 32>}, {transform_indices = @transform_11, window_bounds = array<i64: 1, 1, 128>}]} {
    %c0 = arith.constant 0 : index
    %c0_0 = arith.constant 0 : index
    %c0_1 = arith.constant 0 : index
    %0 = vector.load %arg1[%c0, %c0_0, %c0_1] : memref<1x8x128xbf16, #tpu.memory_space<vmem>>, vector<1x8x128xbf16>
    %1 = vector.shape_cast %0 : vector<1x8x128xbf16> to vector<8x128xbf16>
    %c0_2 = arith.constant 0 : index
    %c0_3 = arith.constant 0 : index
    %c0_4 = arith.constant 0 : index
    %2 = vector.load %arg2[%c0_2, %c0_3, %c0_4] : memref<1x8x32xf32, #tpu.memory_space<vmem>>, vector<1x8x32xf32>
    %3 = vector.shape_cast %2 : vector<1x8x32xf32> to vector<8x32xf32>
    %c0_5 = arith.constant 0 : index
    %c0_6 = arith.constant 0 : index
    %c0_7 = arith.constant 0 : index
    %4 = vector.load %arg3[%c0_5, %c0_6, %c0_7] : memref<1x8x99xf32, #tpu.memory_space<vmem>>, vector<1x8x99xf32>
    %5 = vector.shape_cast %4 : vector<1x8x99xf32> to vector<8x99xf32>
    %6 = vector.extract_strided_slice %5 {offsets = [0, 0], sizes = [8, 32], strides = [1, 1]} : vector<8x99xf32> to vector<8x32xf32>
    %7 = vector.extract_strided_slice %5 {offsets = [0, 32], sizes = [8, 32], strides = [1, 1]} : vector<8x99xf32> to vector<8x32xf32>
    %8 = vector.extract_strided_slice %5 {offsets = [0, 64], sizes = [8, 32], strides = [1, 1]} : vector<8x99xf32> to vector<8x32xf32>
    %9 = vector.extract_strided_slice %5 {offsets = [0, 96], sizes = [8, 3], strides = [1, 1]} : vector<8x99xf32> to vector<8x3xf32>
    %c0_8 = arith.constant 0 : index
    %c0_9 = arith.constant 0 : index
    %10 = vector.load %arg9[%c0_8, %c0_9] : memref<128x32xbf16, #tpu.memory_space<vmem>>, vector<128x32xbf16>
    %cst = arith.constant dense<0.000000e+00> : vector<8x32xf32>
    %11 = tpu.matmul %1, %10, %cst {dimension_numbers = #tpu.dot_dimension_numbers<[1], [0], [0], [1], [0, 0, 1, 1], [], []>} : vector<8x128xbf16>, vector<128x32xbf16>, vector<8x32xf32> -> vector<8x32xf32>
    %c0_10 = arith.constant 0 : index
    %c0_11 = arith.constant 0 : index
    %12 = vector.load %arg10[%c0_10, %c0_11] : memref<64x64xf32, #tpu.memory_space<vmem>>, vector<32x64xf32>
    %cst_12 = arith.constant dense<0.000000e+00> : vector<8x64xf32>
    %13 = tpu.matmul %3, %12, %cst_12 {dimension_numbers = #tpu.dot_dimension_numbers<[1], [0], [0], [1], [0, 0, 1, 1], [], []>} : vector<8x32xf32>, vector<32x64xf32>, vector<8x64xf32> -> vector<8x64xf32>
    %c32 = arith.constant 32 : index
    %c0_13 = arith.constant 0 : index
    %14 = vector.load %arg10[%c32, %c0_13] : memref<64x64xf32, #tpu.memory_space<vmem>>, vector<32x64xf32>
    %cst_14 = arith.constant dense<0.000000e+00> : vector<8x64xf32>
    %15 = tpu.matmul %11, %14, %cst_14 {dimension_numbers = #tpu.dot_dimension_numbers<[1], [0], [0], [1], [0, 0, 1, 1], [], []>} : vector<8x32xf32>, vector<32x64xf32>, vector<8x64xf32> -> vector<8x64xf32>
    %16 = arith.addf %13, %15 : vector<8x64xf32>
    %17 = vector.extract_strided_slice %16 {offsets = [0, 0], sizes = [8, 32], strides = [1, 1]} : vector<8x64xf32> to vector<8x32xf32>
    %18 = math.tanh %17 : vector<8x32xf32>
    %19 = vector.extract_strided_slice %16 {offsets = [0, 32], sizes = [8, 32], strides = [1, 1]} : vector<8x64xf32> to vector<8x32xf32>
    %20 = math.tanh %19 : vector<8x32xf32>
    %21 = math.exp %20 : vector<8x32xf32>
    %22 = arith.mulf %21, %21 : vector<8x32xf32>
    %23 = arith.mulf %7, %7 : vector<8x32xf32>
    %24 = arith.subf %6, %18 : vector<8x32xf32>
    %25 = math.log %23 : vector<8x32xf32>
    %cst_15 = arith.constant 2.000000e+00 : f32
    %26 = vector.broadcast %cst_15 : f32 to vector<8x32xf32>
    %27 = arith.mulf %26, %20 : vector<8x32xf32>
    %28 = arith.subf %25, %27 : vector<8x32xf32>
    %cst_16 = arith.constant 1.000000e+00 : f32
    %29 = vector.broadcast %cst_16 : f32 to vector<8x32xf32>
    %30 = arith.subf %28, %29 : vector<8x32xf32>
    %31 = arith.mulf %24, %24 : vector<8x32xf32>
    %32 = arith.addf %22, %31 : vector<8x32xf32>
    %33 = arith.divf %32, %23 : vector<8x32xf32>
    %34 = arith.addf %30, %33 : vector<8x32xf32>
    %35 = vector.shape_cast %34 : vector<8x32xf32> to vector<1x8x32xf32>
    %cst_17 = arith.constant dense<0.000000e+00> : vector<1xf32>
    %36 = vector.multi_reduction <add>, %35, %cst_17 [1, 2] : vector<1x8x32xf32> to vector<1xf32>
    %37 = vector.shape_cast %36 : vector<1xf32> to vector<1x1x1xf32>
    %38 = vector.extract %37[0, 0, 0] : f32 from vector<1x1x1xf32>
    %cst_18 = arith.constant 5.000000e-01 : f32
    %39 = arith.mulf %cst_18, %38 : f32
    %c0_19 = arith.constant 0 : index
    %c0_20 = arith.constant 0 : index
    %c0_21 = arith.constant 0 : index
    %40 = vector.load %arg7[%c0_19, %c0_20, %c0_21] : memref<1x128x16xbf16, #tpu.memory_space<vmem>>, vector<1x128x16xbf16>
    %41 = vector.shape_cast %40 : vector<1x128x16xbf16> to vector<128x16xbf16>
    %cst_22 = arith.constant dense<0.000000e+00> : vector<8x16xf32>
    %42 = tpu.matmul %1, %41, %cst_22 {dimension_numbers = #tpu.dot_dimension_numbers<[1], [0], [0], [1], [0, 0, 1, 1], [], []>} : vector<8x128xbf16>, vector<128x16xbf16>, vector<8x16xf32> -> vector<8x16xf32>
    %c0_23 = arith.constant 0 : index
    %c0_24 = arith.constant 0 : index
    %c0_25 = arith.constant 0 : index
    %43 = vector.load %arg8[%c0_23, %c0_24, %c0_25] : memref<1x128x8xbf16, #tpu.memory_space<vmem>>, vector<1x128x8xbf16>
    %44 = vector.shape_cast %43 : vector<1x128x8xbf16> to vector<128x8xbf16>
    %cst_26 = arith.constant dense<0.000000e+00> : vector<8x8xf32>
    %45 = tpu.matmul %1, %44, %cst_26 {dimension_numbers = #tpu.dot_dimension_numbers<[1], [0], [0], [1], [0, 0, 1, 1], [], []>} : vector<8x128xbf16>, vector<128x8xbf16>, vector<8x8xf32> -> vector<8x8xf32>
    %c0_27 = arith.constant 0 : index
    %c0_28 = arith.constant 0 : index
    %c0_29 = arith.constant 0 : index
    %46 = vector.load %arg4[%c0_27, %c0_28, %c0_29] : memref<1x8x16xf32, #tpu.memory_space<vmem>>, vector<1x8x16xf32>
    %47 = vector.shape_cast %46 : vector<1x8x16xf32> to vector<8x16xf32>
    %48 = arith.mulf %47, %42 : vector<8x16xf32>
    %cst_30 = arith.constant dense<0.000000e+00> : vector<8xf32>
    %49 = vector.multi_reduction <add>, %48, %cst_30 [1] : vector<8x16xf32> to vector<8xf32>
    %50 = vector.shape_cast %49 : vector<8xf32> to vector<8x1xf32>
    %c0_31 = arith.constant 0 : index
    %c0_32 = arith.constant 0 : index
    %c0_33 = arith.constant 0 : index
    %51 = vector.load %arg5[%c0_31, %c0_32, %c0_33] : memref<1x8x8xf32, #tpu.memory_space<vmem>>, vector<1x8x8xf32>
    %52 = vector.shape_cast %51 : vector<1x8x8xf32> to vector<8x8xf32>
    %53 = arith.mulf %52, %45 : vector<8x8xf32>
    %cst_34 = arith.constant dense<0.000000e+00> : vector<8xf32>
    %54 = vector.multi_reduction <add>, %53, %cst_34 [1] : vector<8x8xf32> to vector<8xf32>
    %55 = vector.shape_cast %54 : vector<8xf32> to vector<8x1xf32>
    %c0_35 = arith.constant 0 : index
    %c0_36 = arith.constant 0 : index
    %c0_37 = arith.constant 0 : index
    %56 = vector.load %arg6[%c0_35, %c0_36, %c0_37] : memref<1x8x128xf32, #tpu.memory_space<vmem>>, vector<1x8x128xf32>
    %57 = vector.shape_cast %56 : vector<1x8x128xf32> to vector<8x128xf32>
    %58 = arith.extf %1 : vector<8x128xbf16> to vector<8x128xf32>
    %59 = arith.mulf %57, %58 : vector<8x128xf32>
    %cst_38 = arith.constant dense<0.000000e+00> : vector<8xf32>
    %60 = vector.multi_reduction <add>, %59, %cst_38 [1] : vector<8x128xf32> to vector<8xf32>
    %61 = vector.shape_cast %60 : vector<8xf32> to vector<8x1xf32>
    %62 = arith.mulf %21, %8 : vector<8x32xf32>
    %63 = arith.addf %18, %62 : vector<8x32xf32>
    %c0_39 = arith.constant 0 : index
    %c0_40 = arith.constant 0 : index
    %64 = vector.load %arg11[%c0_39, %c0_40] : memref<3x32xf32, #tpu.memory_space<vmem>>, vector<3x32xf32>
    %65 = vector.extract_strided_slice %64 {offsets = [0, 0], sizes = [1, 32], strides = [1, 1]} : vector<3x32xf32> to vector<1x32xf32>
    %66 = vector.broadcast %65 : vector<1x32xf32> to vector<8x32xf32>
    %67 = arith.mulf %63, %66 : vector<8x32xf32>
    %cst_41 = arith.constant dense<0.000000e+00> : vector<8xf32>
    %68 = vector.multi_reduction <add>, %67, %cst_41 [1] : vector<8x32xf32> to vector<8xf32>
    %69 = vector.shape_cast %68 : vector<8xf32> to vector<8x1xf32>
    %70 = vector.extract_strided_slice %9 {offsets = [0, 0], sizes = [8, 1], strides = [1, 1]} : vector<8x3xf32> to vector<8x1xf32>
    %71 = arith.addf %69, %70 : vector<8x1xf32>
    %cst_42 = arith.constant 5.000000e+00 : f32
    %72 = vector.broadcast %cst_42 : f32 to vector<8x1xf32>
    %73 = arith.mulf %71, %72 : vector<8x1xf32>
    %74 = vector.extract_strided_slice %64 {offsets = [1, 0], sizes = [1, 32], strides = [1, 1]} : vector<3x32xf32> to vector<1x32xf32>
    %75 = vector.broadcast %74 : vector<1x32xf32> to vector<8x32xf32>
    %76 = arith.mulf %63, %75 : vector<8x32xf32>
    %cst_43 = arith.constant dense<0.000000e+00> : vector<8xf32>
    %77 = vector.multi_reduction <add>, %76, %cst_43 [1] : vector<8x32xf32> to vector<8xf32>
    %78 = vector.shape_cast %77 : vector<8xf32> to vector<8x1xf32>
    %79 = vector.extract_strided_slice %9 {offsets = [0, 1], sizes = [8, 1], strides = [1, 1]} : vector<8x3xf32> to vector<8x1xf32>
    %80 = arith.addf %78, %79 : vector<8x1xf32>
    %cst_44 = arith.constant 5.000000e+00 : f32
    %81 = vector.broadcast %cst_44 : f32 to vector<8x1xf32>
    %82 = arith.mulf %80, %81 : vector<8x1xf32>
    %83 = vector.extract_strided_slice %64 {offsets = [2, 0], sizes = [1, 32], strides = [1, 1]} : vector<3x32xf32> to vector<1x32xf32>
    %84 = vector.broadcast %83 : vector<1x32xf32> to vector<8x32xf32>
    %85 = arith.mulf %63, %84 : vector<8x32xf32>
    %cst_45 = arith.constant dense<0.000000e+00> : vector<8xf32>
    %86 = vector.multi_reduction <add>, %85, %cst_45 [1] : vector<8x32xf32> to vector<8xf32>
    %87 = vector.shape_cast %86 : vector<8xf32> to vector<8x1xf32>
    %88 = vector.extract_strided_slice %9 {offsets = [0, 2], sizes = [8, 1], strides = [1, 1]} : vector<8x3xf32> to vector<8x1xf32>
    %89 = arith.addf %87, %88 : vector<8x1xf32>
    %cst_46 = arith.constant 5.000000e+00 : f32
    %90 = vector.broadcast %cst_46 : f32 to vector<8x1xf32>
    %91 = arith.mulf %89, %90 : vector<8x1xf32>
    %92 = arith.maximumf %73, %82 : vector<8x1xf32>
    %93 = arith.maximumf %92, %91 : vector<8x1xf32>
    %94 = arith.subf %73, %93 : vector<8x1xf32>
    %95 = math.exp %94 : vector<8x1xf32>
    %96 = arith.subf %82, %93 : vector<8x1xf32>
    %97 = math.exp %96 : vector<8x1xf32>
    %98 = arith.subf %91, %93 : vector<8x1xf32>
    %99 = math.exp %98 : vector<8x1xf32>
    %100 = arith.mulf %95, %55 : vector<8x1xf32>
    %101 = arith.mulf %97, %50 : vector<8x1xf32>
    %102 = arith.addf %100, %101 : vector<8x1xf32>
    %103 = arith.mulf %99, %61 : vector<8x1xf32>
    %104 = arith.addf %102, %103 : vector<8x1xf32>
    %105 = arith.addf %95, %97 : vector<8x1xf32>
    %106 = arith.addf %105, %99 : vector<8x1xf32>
    %107 = math.log %104 : vector<8x1xf32>
    %108 = math.log %106 : vector<8x1xf32>
    %109 = arith.subf %107, %108 : vector<8x1xf32>
    %110 = vector.shape_cast %109 : vector<8x1xf32> to vector<1x8x1xf32>
    %cst_47 = arith.constant dense<0.000000e+00> : vector<1xf32>
    %111 = vector.multi_reduction <add>, %110, %cst_47 [1, 2] : vector<1x8x1xf32> to vector<1xf32>
    %112 = vector.shape_cast %111 : vector<1xf32> to vector<1x1x1xf32>
    %113 = vector.extract %112[0, 0, 0] : f32 from vector<1x1x1xf32>
    %114 = arith.subf %113, %39 : f32
    %115 = vector.broadcast %114 : f32 to vector<1x1x128xf32>
    %c0_48 = arith.constant 0 : index
    %c0_49 = arith.constant 0 : index
    %c0_50 = arith.constant 0 : index
    %116 = vector.load %arg12[%c0_48, %c0_49, %c0_50] : memref<1x1x128xf32, #tpu.memory_space<vmem>>, vector<1x1x128xf32>
    tpu.vector_store %arg12[%c0_48, %c0_49, %c0_50], %115 {strides = array<i32>} : memref<1x1x128xf32, #tpu.memory_space<vmem>>, vector<1x1x128xf32>,
    return
  }
  func.func @transform_0(%arg0: i32) -> (i32, i32, i32) {
    %c0_i32 = arith.constant 0 : i32
    %c0_i32_0 = arith.constant 0 : i32
    %c0_i32_1 = arith.constant 0 : i32
    return %arg0, %c0_i32, %c0_i32_0 : i32, i32, i32
  }
  func.func @transform_1(%arg0: i32) -> (i32, i32, i32) {
    %c0_i32 = arith.constant 0 : i32
    %c0_i32_0 = arith.constant 0 : i32
    %c0_i32_1 = arith.constant 0 : i32
    return %arg0, %c0_i32, %c0_i32_0 : i32, i32, i32
  }
  func.func @transform_2(%arg0: i32) -> (i32, i32, i32) {
    %c0_i32 = arith.constant 0 : i32
    %c0_i32_0 = arith.constant 0 : i32
    %c0_i32_1 = arith.constant 0 : i32
    return %arg0, %c0_i32, %c0_i32_0 : i32, i32, i32
  }
  func.func @transform_3(%arg0: i32) -> (i32, i32, i32) {
    %c0_i32 = arith.constant 0 : i32
    %c0_i32_0 = arith.constant 0 : i32
    %c0_i32_1 = arith.constant 0 : i32
    return %arg0, %c0_i32, %c0_i32_0 : i32, i32, i32
  }
  func.func @transform_4(%arg0: i32) -> (i32, i32, i32) {
    %c0_i32 = arith.constant 0 : i32
    %c0_i32_0 = arith.constant 0 : i32
    %c0_i32_1 = arith.constant 0 : i32
    return %arg0, %c0_i32, %c0_i32_0 : i32, i32, i32
  }
  func.func @transform_5(%arg0: i32) -> (i32, i32, i32) {
    %c0_i32 = arith.constant 0 : i32
    %c0_i32_0 = arith.constant 0 : i32
    %c0_i32_1 = arith.constant 0 : i32
    return %arg0, %c0_i32, %c0_i32_0 : i32, i32, i32
  }
  func.func @transform_6(%arg0: i32) -> (i32, i32, i32) {
    %c0_i32 = arith.constant 0 : i32
    %c0_i32_0 = arith.constant 0 : i32
    %c0_i32_1 = arith.constant 0 : i32
    return %arg0, %c0_i32, %c0_i32_0 : i32, i32, i32
  }
  func.func @transform_7(%arg0: i32) -> (i32, i32, i32) {
    %c0_i32 = arith.constant 0 : i32
    %c0_i32_0 = arith.constant 0 : i32
    %c0_i32_1 = arith.constant 0 : i32
    return %arg0, %c0_i32, %c0_i32_0 : i32, i32, i32
  }
  func.func @transform_8(%arg0: i32) -> (i32, i32) {
    %c0_i32 = arith.constant 0 : i32
    %c0_i32_0 = arith.constant 0 : i32
    %c0_i32_1 = arith.constant 0 : i32
    return %c0_i32, %c0_i32_0 : i32, i32
  }
  func.func @transform_9(%arg0: i32) -> (i32, i32) {
    %c0_i32 = arith.constant 0 : i32
    %c0_i32_0 = arith.constant 0 : i32
    %c0_i32_1 = arith.constant 0 : i32
    return %c0_i32, %c0_i32_0 : i32, i32
  }
  func.func @transform_10(%arg0: i32) -> (i32, i32) {
    %c0_i32 = arith.constant 0 : i32
    %c0_i32_0 = arith.constant 0 : i32
    %c0_i32_1 = arith.constant 0 : i32
    return %c0_i32, %c0_i32_0 : i32, i32
  }
  func.func @transform_11(%arg0: i32) -> (i32, i32, i32) {
    %c0_i32 = arith.constant 0 : i32
    %c0_i32_0 = arith.constant 0 : i32
    %c0_i32_1 = arith.constant 0 : i32
    return %arg0, %c0_i32, %c0_i32_0 : i32, i32, i32
  }
}

</mosaic_0001>

<llo_original>
// kernel: tpu_custom_call.1
$region0: #{tpu_custom_call.1}
  #allocation0 [shape = 'u32[]', space=smem, size = 0x4, offset = 0x4, fixed_abs, tag = 'smem constant byte address 0x4 - core index']
  #allocation1 [shape = 'u32[144,128]{1,0:T(1,128)}', space=vmem, size = 0x12000, scoped, tag = 'internal scratch']
  %s0 = inlined_call_operand.vmem [shape: bf16[2,8,128], index: 0, kind: input, shape index: {}]
  %s1 = inlined_call_operand.vmem [shape: f32[2,8,32], index: 1, kind: input, shape index: {}]
  %s2 = inlined_call_operand.vmem [shape: f32[2,8,99], index: 2, kind: input, shape index: {}]
  %s3 = inlined_call_operand.vmem [shape: f32[2,8,16], index: 3, kind: input, shape index: {}]
  %s4 = inlined_call_operand.vmem [shape: f32[2,8,8], index: 4, kind: input, shape index: {}]
  %s5 = inlined_call_operand.vmem [shape: f32[2,8,128], index: 5, kind: input, shape index: {}]
  %s6 = inlined_call_operand.vmem [shape: bf16[2,128,16], index: 6, kind: input, shape index: {}]
  %s7 = inlined_call_operand.vmem [shape: bf16[2,128,8], index: 7, kind: input, shape index: {}]
  %s8 = inlined_call_operand.vmem [shape: bf16[128,32], index: 8, kind: input, shape index: {}]
  %s9 = inlined_call_operand.vmem [shape: f32[64,64], index: 9, kind: input, shape index: {}]
  %s10 = inlined_call_operand.vmem [shape: f32[3,32], index: 10, kind: input, shape index: {}]
  %s11 = inlined_call_operand.hbm [shape: f32[2,1,128], index: 11, kind: output, shape index: {}]
  %s12 = sld [smem:[#allocation0]]
  $region77: #{tpu_custom_call.1} parent=0
    _
  %s14 = ssub.s32 1, %s12
  %s15 = scalar_select 0, %s14, %s12
  $region1: #{tpu_custom_call.1} parent=0
    #allocation2 [shape = 'u8[1024]{0}', space=vmem, size = 0x400, scoped, tag = 'output window, operand 0']
    #allocation3 [shape = 's32[2]{0}', space=sflag, size = 0x8, scoped, tag = 'scoped memory for tpu_custom_call.1']
    %16 = vsyncpa [#allocation3], 0
    %s17 = scalar_lea.sflag [#allocation3], 1
    %18 = vsyncpa %s17, 0
    loop: start=0, step=1, limit=4
    $region2: #{tpu_custom_call.1} parent=1 // loop_pre_header
      _
    $region3: #{tpu_custom_call.1} parent=1 // loop_header
      %s20 = sphi 0, %s24
      %p21 = scmp.ge.s32.totalorder %s20, 4
      %s30 = sphi 0, %s32
      %s33 = sphi 0, %s30
      %s34 = sphi 0, %s33
      %s50 = sphi 0, %s34
      %s56 = sphi 0, %s58
      %s59 = sphi 0, %s56
      %s60 = sphi 0, %s59
      %s76 = sphi 0, %s60
      %s82 = sphi 0, %s84
      %s85 = sphi 0, %s82
      %s86 = sphi 0, %s85
      %s102 = sphi 0, %s86
      %s108 = sphi 0, %s110
      %s111 = sphi 0, %s108
      %s112 = sphi 0, %s111
      %s128 = sphi 0, %s112
      %s134 = sphi 0, %s136
      %s137 = sphi 0, %s134
      %s138 = sphi 0, %s137
      %s154 = sphi 0, %s138
      %s160 = sphi 0, %s162
      %s163 = sphi 0, %s160
      %s164 = sphi 0, %s163
      %s180 = sphi 0, %s164
      %s186 = sphi 0, %s188
      %s189 = sphi 0, %s186
      %s190 = sphi 0, %s189
      %s206 = sphi 0, %s190
      %s212 = sphi 0, %s214
      %s215 = sphi 0, %s212
      %s216 = sphi 0, %s215
      %s232 = sphi 0, %s216
      %s236 = sphi 0, %s236
      %s238 = sphi 0, %s236
      %s239 = sphi 0, %s238
      %s253 = sphi 0, %s239
      %s257 = sphi 0, %s257
      %s259 = sphi 0, %s257
      %s260 = sphi 0, %s259
      %s274 = sphi 0, %s260
      %s278 = sphi 0, %s278
      %s280 = sphi 0, %s278
      %s281 = sphi 0, %s280
      %s295 = sphi 0, %s281
      %s301 = sphi 0, %s303
      %s304 = sphi 0, %s301
      %s305 = sphi 0, %s304
      %s321 = sphi 0, %s305
    $region4: #{tpu_custom_call.1} parent=1 // loop_header_branch
      %23 = sbr.rel (%p21) target = $region8
    $region5: #{tpu_custom_call.1} parent=1 // loop_body
      %s25 = ssub.s32 %s20, 1
      %s26 = ssub.s32 %s20, 2
      %s27 = sadd.s32 %s20, 1
      %s28 = ssub.s32 %s20, %s27
      %p29 = scmp.eq.s32.totalorder %s28, 0
      %s31 = sadd.s32 %s30, 1
      %s32 = scalar_select %p29, %s30, %s31
      %p35 = pneg %p29
      %p36 = scmp.eq.s32.totalorder %s20, 1
      %p37 = por %p35, %p36
      %p38 = scmp.ne.s32.totalorder %s30, %s33
      %p39 = scmp.eq.s32.totalorder %s20, 0
      %p40 = por %p38, %p39
      %p41 = scmp.ne.s32.totalorder %s30, %s33
      %p42 = scmp.eq.s32.totalorder %s25, 1
      %p43 = por %p41, %p42
      %p44 = scmp.ne.s32.totalorder %s33, %s34
      %p45 = scmp.eq.s32.totalorder %s25, 0
      %p46 = por %p44, %p45
      %p47 = scmp.ne.s32.totalorder %s33, %s34
      %p48 = scmp.eq.s32.totalorder %s26, 1
      %p49 = por %p47, %p48
      %p51 = scmp.ne.s32.totalorder %s34, %s50
      %p52 = scmp.eq.s32.totalorder %s26, 0
      %p53 = por %p51, %p52
      %s54 = ssub.s32 %s20, %s27
      %p55 = scmp.eq.s32.totalorder %s54, 0
      %s57 = sadd.s32 %s56, 1
      %s58 = scalar_select %p55, %s56, %s57
      %p61 = pneg %p55
      %p62 = scmp.eq.s32.totalorder %s20, 1
      %p63 = por %p61, %p62
      %p64 = scmp.ne.s32.totalorder %s56, %s59
      %p65 = scmp.eq.s32.totalorder %s20, 0
      %p66 = por %p64, %p65
      %p67 = scmp.ne.s32.totalorder %s56, %s59
      %p68 = scmp.eq.s32.totalorder %s25, 1
      %p69 = por %p67, %p68
      %p70 = scmp.ne.s32.totalorder %s59, %s60
      %p71 = scmp.eq.s32.totalorder %s25, 0
      %p72 = por %p70, %p71
      %p73 = scmp.ne.s32.totalorder %s59, %s60
      %p74 = scmp.eq.s32.totalorder %s26, 1
      %p75 = por %p73, %p74
      %p77 = scmp.ne.s32.totalorder %s60, %s76
      %p78 = scmp.eq.s32.totalorder %s26, 0
      %p79 = por %p77, %p78
      %s80 = ssub.s32 %s20, %s27
      %p81 = scmp.eq.s32.totalorder %s80, 0
      %s83 = sadd.s32 %s82, 1
      %s84 = scalar_select %p81, %s82, %s83
      %p87 = pneg %p81
      %p88 = scmp.eq.s32.totalorder %s20, 1
      %p89 = por %p87, %p88
      %p90 = scmp.ne.s32.totalorder %s82, %s85
      %p91 = scmp.eq.s32.totalorder %s20, 0
      %p92 = por %p90, %p91
      %p93 = scmp.ne.s32.totalorder %s82, %s85
      %p94 = scmp.eq.s32.totalorder %s25, 1
      %p95 = por %p93, %p94
      %p96 = scmp.ne.s32.totalorder %s85, %s86
      %p97 = scmp.eq.s32.totalorder %s25, 0
      %p98 = por %p96, %p97
      %p99 = scmp.ne.s32.totalorder %s85, %s86
      %p100 = scmp.eq.s32.totalorder %s26, 1
      %p101 = por %p99, %p100
      %p103 = scmp.ne.s32.totalorder %s86, %s102
      %p104 = scmp.eq.s32.totalorder %s26, 0
      %p105 = por %p103, %p104
      %s106 = ssub.s32 %s20, %s27
      %p107 = scmp.eq.s32.totalorder %s106, 0
      %s109 = sadd.s32 %s108, 1
      %s110 = scalar_select %p107, %s108, %s109
      %p113 = pneg %p107
      %p114 = scmp.eq.s32.totalorder %s20, 1
      %p115 = por %p113, %p114
      %p116 = scmp.ne.s32.totalorder %s108, %s111
      %p117 = scmp.eq.s32.totalorder %s20, 0
      %p118 = por %p116, %p117
      %p119 = scmp.ne.s32.totalorder %s108, %s111
      %p120 = scmp.eq.s32.totalorder %s25, 1
      %p121 = por %p119, %p120
      %p122 = scmp.ne.s32.totalorder %s111, %s112
      %p123 = scmp.eq.s32.totalorder %s25, 0
      %p124 = por %p122, %p123
      %p125 = scmp.ne.s32.totalorder %s111, %s112
      %p126 = scmp.eq.s32.totalorder %s26, 1
      %p127 = por %p125, %p126
      %p129 = scmp.ne.s32.totalorder %s112, %s128
      %p130 = scmp.eq.s32.totalorder %s26, 0
      %p131 = por %p129, %p130
      %s132 = ssub.s32 %s20, %s27
      %p133 = scmp.eq.s32.totalorder %s132, 0
      %s135 = sadd.s32 %s134, 1
      %s136 = scalar_select %p133, %s134, %s135
      %p139 = pneg %p133
      %p140 = scmp.eq.s32.totalorder %s20, 1
      %p141 = por %p139, %p140
      %p142 = scmp.ne.s32.totalorder %s134, %s137
      %p143 = scmp.eq.s32.totalorder %s20, 0
      %p144 = por %p142, %p143
      %p145 = scmp.ne.s32.totalorder %s134, %s137
      %p146 = scmp.eq.s32.totalorder %s25, 1
      %p147 = por %p145, %p146
      %p148 = scmp.ne.s32.totalorder %s137, %s138
      %p149 = scmp.eq.s32.totalorder %s25, 0
      %p150 = por %p148, %p149
      %p151 = scmp.ne.s32.totalorder %s137, %s138
      %p152 = scmp.eq.s32.totalorder %s26, 1
      %p153 = por %p151, %p152
      %p155 = scmp.ne.s32.totalorder %s138, %s154
      %p156 = scmp.eq.s32.totalorder %s26, 0
      %p157 = por %p155, %p156
      %s158 = ssub.s32 %s20, %s27
      %p159 = scmp.eq.s32.totalorder %s158, 0
      %s161 = sadd.s32 %s160, 1
      %s162 = scalar_select %p159, %s160, %s161
      %p165 = pneg %p159
      %p166 = scmp.eq.s32.totalorder %s20, 1
      %p167 = por %p165, %p166
      %p168 = scmp.ne.s32.totalorder %s160, %s163
      %p169 = scmp.eq.s32.totalorder %s20, 0
      %p170 = por %p168, %p169
      %p171 = scmp.ne.s32.totalorder %s160, %s163
      %p172 = scmp.eq.s32.totalorder %s25, 1
      %p173 = por %p171, %p172
      %p174 = scmp.ne.s32.totalorder %s163, %s164
      %p175 = scmp.eq.s32.totalorder %s25, 0
      %p176 = por %p174, %p175
      %p177 = scmp.ne.s32.totalorder %s163, %s164
      %p178 = scmp.eq.s32.totalorder %s26, 1
      %p179 = por %p177, %p178
      %p181 = scmp.ne.s32.totalorder %s164, %s180
      %p182 = scmp.eq.s32.totalorder %s26, 0
      %p183 = por %p181, %p182
      %s184 = ssub.s32 %s20, %s27
      %p185 = scmp.eq.s32.totalorder %s184, 0
      %s187 = sadd.s32 %s186, 1
      %s188 = scalar_select %p185, %s186, %s187
      %p191 = pneg %p185
      %p192 = scmp.eq.s32.totalorder %s20, 1
      %p193 = por %p191, %p192
      %p194 = scmp.ne.s32.totalorder %s186, %s189
      %p195 = scmp.eq.s32.totalorder %s20, 0
      %p196 = por %p194, %p195
      %p197 = scmp.ne.s32.totalorder %s186, %s189
      %p198 = scmp.eq.s32.totalorder %s25, 1
      %p199 = por %p197, %p198
      %p200 = scmp.ne.s32.totalorder %s189, %s190
      %p201 = scmp.eq.s32.totalorder %s25, 0
      %p202 = por %p200, %p201
      %p203 = scmp.ne.s32.totalorder %s189, %s190
      %p204 = scmp.eq.s32.totalorder %s26, 1
      %p205 = por %p203, %p204
      %p207 = scmp.ne.s32.totalorder %s190, %s206
      %p208 = scmp.eq.s32.totalorder %s26, 0
      %p209 = por %p207, %p208
      %s210 = ssub.s32 %s20, %s27
      %p211 = scmp.eq.s32.totalorder %s210, 0
      %s213 = sadd.s32 %s212, 1
      %s214 = scalar_select %p211, %s212, %s213
      %p217 = pneg %p211
      %p218 = scmp.eq.s32.totalorder %s20, 1
      %p219 = por %p217, %p218
      %p220 = scmp.ne.s32.totalorder %s212, %s215
      %p221 = scmp.eq.s32.totalorder %s20, 0
      %p222 = por %p220, %p221
      %p223 = scmp.ne.s32.totalorder %s212, %s215
      %p224 = scmp.eq.s32.totalorder %s25, 1
      %p225 = por %p223, %p224
      %p226 = scmp.ne.s32.totalorder %s215, %s216
      %p227 = scmp.eq.s32.totalorder %s25, 0
      %p228 = por %p226, %p227
      %p229 = scmp.ne.s32.totalorder %s215, %s216
      %p230 = scmp.eq.s32.totalorder %s26, 1
      %p231 = por %p229, %p230
      %p233 = scmp.ne.s32.totalorder %s216, %s232
      %p234 = scmp.eq.s32.totalorder %s26, 0
      %p235 = por %p233, %p234
      %s237 = sadd.s32 %s236, 1
      %p240 = scmp.eq.s32.totalorder %s20, 1
      %p241 = scmp.ne.s32.totalorder %s236, %s238
      %p242 = scmp.eq.s32.totalorder %s20, 0
      %p243 = por %p241, %p242
      %p244 = scmp.ne.s32.totalorder %s236, %s238
      %p245 = scmp.eq.s32.totalorder %s25, 1
      %p246 = por %p244, %p245
      %p247 = scmp.ne.s32.totalorder %s238, %s239
      %p248 = scmp.eq.s32.totalorder %s25, 0
      %p249 = por %p247, %p248
      %p250 = scmp.ne.s32.totalorder %s238, %s239
      %p251 = scmp.eq.s32.totalorder %s26, 1
      %p252 = por %p250, %p251
      %p254 = scmp.ne.s32.totalorder %s239, %s253
      %p255 = scmp.eq.s32.totalorder %s26, 0
      %p256 = por %p254, %p255
      %s258 = sadd.s32 %s257, 1
      %p261 = scmp.eq.s32.totalorder %s20, 1
      %p262 = scmp.ne.s32.totalorder %s257, %s259
      %p263 = scmp.eq.s32.totalorder %s20, 0
      %p264 = por %p262, %p263
      %p265 = scmp.ne.s32.totalorder %s257, %s259
      %p266 = scmp.eq.s32.totalorder %s25, 1
      %p267 = por %p265, %p266
      %p268 = scmp.ne.s32.totalorder %s259, %s260
      %p269 = scmp.eq.s32.totalorder %s25, 0
      %p270 = por %p268, %p269
      %p271 = scmp.ne.s32.totalorder %s259, %s260
      %p272 = scmp.eq.s32.totalorder %s26, 1
      %p273 = por %p271, %p272
      %p275 = scmp.ne.s32.totalorder %s260, %s274
      %p276 = scmp.eq.s32.totalorder %s26, 0
      %p277 = por %p275, %p276
      %s279 = sadd.s32 %s278, 1
      %p282 = scmp.eq.s32.totalorder %s20, 1
      %p283 = scmp.ne.s32.totalorder %s278, %s280
      %p284 = scmp.eq.s32.totalorder %s20, 0
      %p285 = por %p283, %p284
      %p286 = scmp.ne.s32.totalorder %s278, %s280
      %p287 = scmp.eq.s32.totalorder %s25, 1
      %p288 = por %p286, %p287
      %p289 = scmp.ne.s32.totalorder %s280, %s281
      %p290 = scmp.eq.s32.totalorder %s25, 0
      %p291 = por %p289, %p290
      %p292 = scmp.ne.s32.totalorder %s280, %s281
      %p293 = scmp.eq.s32.totalorder %s26, 1
      %p294 = por %p292, %p293
      %p296 = scmp.ne.s32.totalorder %s281, %s295
      %p297 = scmp.eq.s32.totalorder %s26, 0
      %p298 = por %p296, %p297
      %s299 = ssub.s32 %s20, %s27
      %p300 = scmp.eq.s32.totalorder %s299, 0
      %s302 = sadd.s32 %s301, 1
      %s303 = scalar_select %p300, %s301, %s302
      %p306 = pneg %p300
      %p307 = scmp.eq.s32.totalorder %s20, 1
      %p308 = por %p306, %p307
      %p309 = scmp.ne.s32.totalorder %s301, %s304
      %p310 = scmp.eq.s32.totalorder %s20, 0
      %p311 = por %p309, %p310
      %p312 = scmp.ne.s32.totalorder %s301, %s304
      %p313 = scmp.eq.s32.totalorder %s25, 1
      %p314 = por %p312, %p313
      %p315 = scmp.ne.s32.totalorder %s304, %s305
      %p316 = scmp.eq.s32.totalorder %s25, 0
      %p317 = por %p315, %p316
      %p318 = scmp.ne.s32.totalorder %s304, %s305
      %p319 = scmp.eq.s32.totalorder %s26, 1
      %p320 = por %p318, %p319
      %p322 = scmp.ne.s32.totalorder %s305, %s321
      %p323 = scmp.eq.s32.totalorder %s26, 0
      %p324 = por %p322, %p323
      %p325 = scmp.le.s32.totalorder 1, %s20
      %p326 = scmp.lt.s32.totalorder %s20, 3
      %p327 = pnand %p325, %p326
      %p328 = pneg %p327
      // Predicated region
      $region9: #{tpu_custom_call.1} parent=5 // pred_check
        _
      $region10: #{tpu_custom_call.1} parent=5 // pred_check_branch
        %330 = sbr.rel (%p327) target = $region12
      $region11: #{tpu_custom_call.1} parent=5 // pred_region
        %s331 = ssub.s32 %s20, 1
        // Predicated region
        $region13: #{tpu_custom_call.1} parent=11 // pred_check
          %p332 = pneg %p249
        $region14: #{tpu_custom_call.1} parent=11 // pred_check_branch
          %334 = sbr.rel (%p332) target = $region16
        $region15: #{tpu_custom_call.1} parent=11 // pred_region
          _
        $region16: #{tpu_custom_call.1} parent=11 // pred_fallthru
          _
        // Predicated region
        $region17: #{tpu_custom_call.1} parent=11 // pred_check
          %p335 = pneg %p270
        $region18: #{tpu_custom_call.1} parent=11 // pred_check_branch
          %337 = sbr.rel (%p335) target = $region20
        $region19: #{tpu_custom_call.1} parent=11 // pred_region
          _
        $region20: #{tpu_custom_call.1} parent=11 // pred_fallthru
          _
        // Predicated region
        $region21: #{tpu_custom_call.1} parent=11 // pred_check
          %p338 = pneg %p291
        $region22: #{tpu_custom_call.1} parent=11 // pred_check_branch
          %340 = sbr.rel (%p338) target = $region24
        $region23: #{tpu_custom_call.1} parent=11 // pred_region
          _
        $region24: #{tpu_custom_call.1} parent=11 // pred_fallthru
          _
      $region12: #{tpu_custom_call.1} parent=5 // pred_fallthru
        _
      %p341 = scmp.lt.s32.totalorder %s20, 2
      // Predicated region
      $region25: #{tpu_custom_call.1} parent=5 // pred_check
        %p342 = pneg %p341
      $region26: #{tpu_custom_call.1} parent=5 // pred_check_branch
        %344 = sbr.rel (%p342) target = $region28
      $region27: #{tpu_custom_call.1} parent=5 // pred_region
        // Predicated region
        $region29: #{tpu_custom_call.1} parent=27 // pred_check
          %p345 = pneg %p40
        $region30: #{tpu_custom_call.1} parent=27 // pred_check_branch
          %347 = sbr.rel (%p345) target = $region32
        $region31: #{tpu_custom_call.1} parent=27 // pred_region
          %p348 = scmp.lt.s32.totalorder %s20, 1
          %s349 = scalar_select %p348, %s20, 1
          %s350 = smul.addr %s349, 4
          %s351 = scalar_lea.vmem %s0, %s350
        $region32: #{tpu_custom_call.1} parent=27 // pred_fallthru
          _
        // Predicated region
        $region33: #{tpu_custom_call.1} parent=27 // pred_check
          %p352 = pneg %p66
        $region34: #{tpu_custom_call.1} parent=27 // pred_check_branch
          %354 = sbr.rel (%p352) target = $region36
        $region35: #{tpu_custom_call.1} parent=27 // pred_region
          %p355 = scmp.lt.s32.totalorder %s20, 1
          %s356 = scalar_select %p355, %s20, 1
          %s357 = smul.addr %s356, 8
          %s358 = scalar_lea.vmem %s1, %s357
        $region36: #{tpu_custom_call.1} parent=27 // pred_fallthru
          _
        // Predicated region
        $region37: #{tpu_custom_call.1} parent=27 // pred_check
          %p359 = pneg %p92
        $region38: #{tpu_custom_call.1} parent=27 // pred_check_branch
          %361 = sbr.rel (%p359) target = $region40
        $region39: #{tpu_custom_call.1} parent=27 // pred_region
          %p362 = scmp.lt.s32.totalorder %s20, 1
          %s363 = scalar_select %p362, %s20, 1
          %s364 = smul.addr %s363, 8
          %s365 = scalar_lea.vmem %s2, %s364
        $region40: #{tpu_custom_call.1} parent=27 // pred_fallthru
          _
        // Predicated region
        $region41: #{tpu_custom_call.1} parent=27 // pred_check
          %p366 = pneg %p118
        $region42: #{tpu_custom_call.1} parent=27 // pred_check_branch
          %368 = sbr.rel (%p366) target = $region44
        $region43: #{tpu_custom_call.1} parent=27 // pred_region
          %p369 = scmp.lt.s32.totalorder %s20, 1
          %s370 = scalar_select %p369, %s20, 1
          %s371 = smul.addr %s370, 8
          %s372 = scalar_lea.vmem %s3, %s371
        $region44: #{tpu_custom_call.1} parent=27 // pred_fallthru
          _
        // Predicated region
        $region45: #{tpu_custom_call.1} parent=27 // pred_check
          %p373 = pneg %p144
        $region46: #{tpu_custom_call.1} parent=27 // pred_check_branch
          %375 = sbr.rel (%p373) target = $region48
        $region47: #{tpu_custom_call.1} parent=27 // pred_region
          %p376 = scmp.lt.s32.totalorder %s20, 1
          %s377 = scalar_select %p376, %s20, 1
          %s378 = smul.addr %s377, 8
          %s379 = scalar_lea.vmem %s4, %s378
        $region48: #{tpu_custom_call.1} parent=27 // pred_fallthru
          _
        // Predicated region
        $region49: #{tpu_custom_call.1} parent=27 // pred_check
          %p380 = pneg %p170
        $region50: #{tpu_custom_call.1} parent=27 // pred_check_branch
          %382 = sbr.rel (%p380) target = $region52
        $region51: #{tpu_custom_call.1} parent=27 // pred_region
          %p383 = scmp.lt.s32.totalorder %s20, 1
          %s384 = scalar_select %p383, %s20, 1
          %s385 = smul.addr %s384, 8
          %s386 = scalar_lea.vmem %s5, %s385
        $region52: #{tpu_custom_call.1} parent=27 // pred_fallthru
          _
        // Predicated region
        $region53: #{tpu_custom_call.1} parent=27 // pred_check
          %p387 = pneg %p196
        $region54: #{tpu_custom_call.1} parent=27 // pred_check_branch
          %389 = sbr.rel (%p387) target = $region56
        $region55: #{tpu_custom_call.1} parent=27 // pred_region
          %p390 = scmp.lt.s32.totalorder %s20, 1
          %s391 = scalar_select %p390, %s20, 1
          %s392 = smul.addr %s391, 16
          %s393 = smul.addr %s392, 4
          %s394 = scalar_lea.vmem %s6, %s393
        $region56: #{tpu_custom_call.1} parent=27 // pred_fallthru
          _
        // Predicated region
        $region57: #{tpu_custom_call.1} parent=27 // pred_check
          %p395 = pneg %p222
        $region58: #{tpu_custom_call.1} parent=27 // pred_check_branch
          %397 = sbr.rel (%p395) target = $region60
        $region59: #{tpu_custom_call.1} parent=27 // pred_region
          %p398 = scmp.lt.s32.totalorder %s20, 1
          %s399 = scalar_select %p398, %s20, 1
          %s400 = smul.addr %s399, 16
          %s401 = smul.addr %s400, 4
          %s402 = scalar_lea.vmem %s7, %s401
        $region60: #{tpu_custom_call.1} parent=27 // pred_fallthru
          _
      $region28: #{tpu_custom_call.1} parent=5 // pred_fallthru
        _
      %p403 = scmp.le.s32.totalorder 1, %s20
      %p404 = scmp.lt.s32.totalorder %s20, 3
      %p405 = pnand %p403, %p404
      %p406 = pneg %p405
      // Predicated region
      $region61: #{tpu_custom_call.1} parent=5 // pred_check
        _
      $region62: #{tpu_custom_call.1} parent=5 // pred_check_branch
        %408 = sbr.rel (%p405) target = $region64
      $region63: #{tpu_custom_call.1} parent=5 // pred_region
        %s409 = ssub.s32 %s20, 1
        %p410 = scmp.lt.s32.totalorder %s25, 1
        %s411 = scalar_select %p410, %s25, 1
        %s412 = smul.addr %s411, 4
        %s413 = scalar_lea.vmem %s0, %s412
        %p414 = pneg %p46
        %p415 = pneg %p43
        %p416 = scmp.lt.s32.totalorder %s25, 1
        %s417 = scalar_select %p416, %s25, 1
        %s418 = smul.addr %s417, 8
        %s419 = scalar_lea.vmem %s1, %s418
        %p420 = pneg %p72
        %p421 = pneg %p69
        %p422 = scmp.lt.s32.totalorder %s25, 1
        %s423 = scalar_select %p422, %s25, 1
        %s424 = smul.addr %s423, 8
        %s425 = scalar_lea.vmem %s2, %s424
        %p426 = pneg %p98
        %p427 = pneg %p95
        %p428 = scmp.lt.s32.totalorder %s25, 1
        %s429 = scalar_select %p428, %s25, 1
        %s430 = smul.addr %s429, 8
        %s431 = scalar_lea.vmem %s3, %s430
        %p432 = pneg %p124
        %p433 = pneg %p121
        %p434 = scmp.lt.s32.totalorder %s25, 1
        %s435 = scalar_select %p434, %s25, 1
        %s436 = smul.addr %s435, 8
        %s437 = scalar_lea.vmem %s4, %s436
        %p438 = pneg %p150
        %p439 = pneg %p147
        %p440 = scmp.lt.s32.totalorder %s25, 1
        %s441 = scalar_select %p440, %s25, 1
        %s442 = smul.addr %s441, 8
        %s443 = scalar_lea.vmem %s5, %s442
        %p444 = pneg %p176
        %p445 = pneg %p173
        %p446 = scmp.lt.s32.totalorder %s25, 1
        %s447 = scalar_select %p446, %s25, 1
        %s448 = smul.addr %s447, 16
        %s449 = smul.addr %s448, 4
        %s450 = scalar_lea.vmem %s6, %s449
        %p451 = pneg %p202
        %p452 = pneg %p199
        %p453 = scmp.lt.s32.totalorder %s25, 1
        %s454 = scalar_select %p453, %s25, 1
        %s455 = smul.addr %s454, 16
        %s456 = smul.addr %s455, 4
        %s457 = scalar_lea.vmem %s7, %s456
        %p458 = pneg %p228
        %p459 = pneg %p225
        %p460 = pneg %p249
        %p461 = pneg %p246
        %p462 = pneg %p270
        %p463 = pneg %p267
        %p464 = pneg %p291
        %p465 = pneg %p288
        %p466 = pneg %p317
        %p467 = pneg %p314
        %s468 = sand.u32 %s304, 1
        %s469 = scalar_lea.sflag [#allocation3], %s468
        %s470 = sand.u32 %s304, 1
        %s471 = scalar_lea.vmem [#allocation2], %s470
        %p472 = scmp.lt.s32.totalorder %s25, 1
        %s473 = scalar_select %p472, %s25, 1
        %s474 = smul.addr %s473, 4
        %s475 = scalar_lea.vmem %s0, %s474
        %p476 = scmp.lt.s32.totalorder %s25, 1
        %s477 = scalar_select %p476, %s25, 1
        %s478 = smul.addr %s477, 8
        %s479 = scalar_lea.vmem %s1, %s478
        %p480 = scmp.lt.s32.totalorder %s25, 1
        %s481 = scalar_select %p480, %s25, 1
        %s482 = smul.addr %s481, 8
        %s483 = scalar_lea.vmem %s2, %s482
        %p484 = scmp.lt.s32.totalorder %s25, 1
        %s485 = scalar_select %p484, %s25, 1
        %s486 = smul.addr %s485, 8
        %s487 = scalar_lea.vmem %s3, %s486
        %p488 = scmp.lt.s32.totalorder %s25, 1
        %s489 = scalar_select %p488, %s25, 1
        %s490 = smul.addr %s489, 8
        %s491 = scalar_lea.vmem %s4, %s490
        %p492 = scmp.lt.s32.totalorder %s25, 1
        %s493 = scalar_select %p492, %s25, 1
        %s494 = smul.addr %s493, 8
        %s495 = scalar_lea.vmem %s5, %s494
        %p496 = scmp.lt.s32.totalorder %s25, 1
        %s497 = scalar_select %p496, %s25, 1
        %s498 = smul.addr %s497, 16
        %s499 = smul.addr %s498, 4
        %s500 = scalar_lea.vmem %s6, %s499
        %p501 = scmp.lt.s32.totalorder %s25, 1
        %s502 = scalar_select %p501, %s25, 1
        %s503 = smul.addr %s502, 16
        %s504 = smul.addr %s503, 4
        %s505 = scalar_lea.vmem %s7, %s504
        %v507 = vld [vmem:[%s475] sm:$0xf]
        %v508 = vld [vmem:[%s479] sm:$0xff]
        %v509 = vld [vmem:[%s483] sm:$0xff]
        %v510 = vld [vmem:[%s8] sm:$0xf]
        %v511 = vld [vmem:[%s8 + $0x4] sm:$0xf]
        %v512 = vld [vmem:[%s8 + $0x8] sm:$0xf]
        %v513 = vld [vmem:[%s8 + $0xc] sm:$0xf]
        %v514 = vld [vmem:[%s8 + $0x10] sm:$0xf]
        %v515 = vld [vmem:[%s8 + $0x14] sm:$0xf]
        %v516 = vld [vmem:[%s8 + $0x18] sm:$0xf]
        %v517 = vld [vmem:[%s8 + $0x1c] sm:$0xf]
        %v518 = vld [vmem:[%s8 + $0x20] sm:$0xf]
        %v519 = vld [vmem:[%s8 + $0x24] sm:$0xf]
        %v520 = vld [vmem:[%s8 + $0x28] sm:$0xf]
        %v521 = vld [vmem:[%s8 + $0x2c] sm:$0xf]
        %v522 = vld [vmem:[%s8 + $0x30] sm:$0xf]
        %v523 = vld [vmem:[%s8 + $0x34] sm:$0xf]
        %v524 = vld [vmem:[%s8 + $0x38] sm:$0xf]
        %v525 = vld [vmem:[%s8 + $0x3c] sm:$0xf]
        %v542 = vunpack.c.l.b16 %v510
        %v543 = vunpack.c.l.b16 %v511
        %v544 = vunpack.c.l.b16 %v512
        %v545 = vunpack.c.l.b16 %v513
        %v546 = vunpack.c.l.b16 %v514
        %v547 = vunpack.c.l.b16 %v515
        %v548 = vunpack.c.l.b16 %v516
        %v549 = vunpack.c.l.b16 %v517
        %v550 = vunpack.c.l.b16 %v518
        %v551 = vunpack.c.l.b16 %v519
        %v552 = vunpack.c.l.b16 %v520
        %v553 = vunpack.c.l.b16 %v521
        %v554 = vunpack.c.l.b16 %v522
        %v555 = vunpack.c.l.b16 %v523
        %v556 = vunpack.c.l.b16 %v524
        %v557 = vunpack.c.l.b16 %v525
        %v558 = vpack.c.b16 %v543, %v542
        %v559 = vpack.c.b16 %v545, %v544
        %v560 = vpack.c.b16 %v547, %v546
        %v561 = vpack.c.b16 %v549, %v548
        %v562 = vpack.c.b16 %v551, %v550
        %v563 = vpack.c.b16 %v553, %v552
        %v564 = vpack.c.b16 %v555, %v554
        %v565 = vpack.c.b16 %v557, %v556
        %574 = vmatprep.subr.bf16.mxu0 0
        %575 = vmatpush1.bf16.msra.mxu0 %v565
        %576 = vmatprep.subr.bf16.mxu0 0
        %577 = vmatpush1.bf16.msra.mxu0 %v564
        %578 = vmatprep.subr.bf16.mxu0 0
        %579 = vmatpush1.bf16.msra.mxu0 %v563
        %580 = vmatprep.subr.bf16.mxu0 0
        %581 = vmatpush1.bf16.msra.mxu0 %v562
        %582 = vmatprep.subr.bf16.mxu0 0
        %583 = vmatpush1.bf16.msra.mxu0 %v561
        %584 = vmatprep.subr.bf16.mxu0 0
        %585 = vmatpush1.bf16.msra.mxu0 %v560
        %586 = vmatprep.subr.bf16.mxu0 0
        %587 = vmatpush1.bf16.msra.mxu0 %v559
        %588 = vmatprep.subr.bf16.mxu0 0
        %589 = vmatpush1.bf16.msra.mxu0 %v558
        %590 = vmatprep.subr.bf16.mxu0 0
        %591 = vmatpush2.bf16.msra.mxu0 0
        %592 = vmatprep.subr.bf16.mxu0 0
        %593 = vmatpush2.bf16.msra.mxu0 0
        %594 = vmatprep.subr.bf16.mxu0 0
        %595 = vmatpush2.bf16.msra.mxu0 0
        %596 = vmatprep.subr.bf16.mxu0 0
        %597 = vmatpush2.bf16.msra.mxu0 0
        %598 = vmatprep.subr.bf16.mxu0 0
        %599 = vmatpush2.bf16.msra.mxu0 0
        %600 = vmatprep.subr.bf16.mxu0 0
        %601 = vmatpush2.bf16.msra.mxu0 0
        %602 = vmatprep.subr.bf16.mxu0 0
        %603 = vmatpush2.bf16.msra.mxu0 0
        %604 = vmatprep.subr.bf16.mxu0 0
        %605 = vmatpush2.bf16.msra.mxu0 0
        %606 = vmatprep.mubr.bf16.mxu0 0
        %607 = vmatmul.mubr.bf16.gmra.mxu0 %v507
        %v608 = vpop.f32.mrf.mxu0
        %v609 = vadd.f32 0.0, %v608
        %v610 = vpop.f32.mrf.mxu0
        %v611 = vpop.f32.mrf.mxu0
        %v612 = vpop.f32.mrf.mxu0
        %613 = vdwg.mxu0
        %v614 = vld [vmem:[%s9] sm:$0xff]
        %v615 = vld [vmem:[%s9 + $0x8] sm:$0xff]
        %v616 = vld [vmem:[%s9 + $0x10] sm:$0xff]
        %v617 = vld [vmem:[%s9 + $0x18] sm:$0xff]
        %v618 = vld [vmem:[%s9 + $0x20] sm:$0xff]
        %v619 = vld [vmem:[%s9 + $0x28] sm:$0xff]
        %v620 = vld [vmem:[%s9 + $0x30] sm:$0xff]
        %v621 = vld [vmem:[%s9 + $0x38] sm:$0xff]
        %vm622 = vcmask 261120
        %v624 = vsel %vm622, %v609, 0
        %626 = vmatprep.subr.mxu0 0.0
        %627 = vmatpush1.msra.mxu0 0.0
        %628 = vmatprep.subr.mxu0 0.0
        %629 = vmatpush1.msra.mxu0 0.0
        %630 = vmatprep.subr.mxu0 0.0
        %631 = vmatpush1.msra.mxu0 0.0
        %632 = vmatprep.subr.mxu0 0.0
        %633 = vmatpush1.msra.mxu0 0.0
        %634 = vmatprep.subr.mxu0 0.0
        %635 = vmatpush1.msra.mxu0 0.0
        %636 = vmatprep.subr.mxu0 0.0
        %637 = vmatpush1.msra.mxu0 0.0
        %638 = vmatprep.subr.mxu0 0.0
        %639 = vmatpush1.msra.mxu0 0.0
        %640 = vmatprep.subr.mxu0 0.0
        %641 = vmatpush1.msra.mxu0 0.0
        %642 = vmatprep.subr.mxu0 0.0
        %643 = vmatpush1.msra.mxu0 0.0
        %644 = vmatprep.subr.mxu0 0.0
        %645 = vmatpush1.msra.mxu0 0.0
        %646 = vmatprep.subr.mxu0 0.0
        %647 = vmatpush1.msra.mxu0 0.0
        %648 = vmatprep.subr.mxu0 0.0
        %649 = vmatpush1.msra.mxu0 0.0
        %650 = vmatprep.subr.mxu0 0.0
        %651 = vmatpush1.msra.mxu0 %v621
        %652 = vmatprep.subr.mxu0 0.0
        %653 = vmatpush1.msra.mxu0 %v620
        %654 = vmatprep.subr.mxu0 0.0
        %655 = vmatpush1.msra.mxu0 %v619
        %656 = vmatprep.subr.mxu0 0.0
        %657 = vmatpush1.msra.mxu0 %v618
        %658 = vmatprep.subr.mxu0 0.0
        %659 = vmatpush2.msra.mxu0 0.0
        %660 = vmatprep.subr.mxu0 0.0
        %661 = vmatpush2.msra.mxu0 0.0
        %662 = vmatprep.subr.mxu0 0.0
        %663 = vmatpush2.msra.mxu0 0.0
        %664 = vmatprep.subr.mxu0 0.0
        %665 = vmatpush2.msra.mxu0 0.0
        %666 = vmatprep.subr.mxu0 0.0
        %667 = vmatpush2.msra.mxu0 0.0
        %668 = vmatprep.subr.mxu0 0.0
        %669 = vmatpush2.msra.mxu0 0.0
        %670 = vmatprep.subr.mxu0 0.0
        %671 = vmatpush2.msra.mxu0 0.0
        %672 = vmatprep.subr.mxu0 0.0
        %673 = vmatpush2.msra.mxu0 0.0
        %674 = vmatprep.subr.mxu0 0.0
        %675 = vmatpush2.msra.mxu0 0.0
        %676 = vmatprep.subr.mxu0 0.0
        %677 = vmatpush2.msra.mxu0 0.0
        %678 = vmatprep.subr.mxu0 0.0
        %679 = vmatpush2.msra.mxu0 0.0
        %680 = vmatprep.subr.mxu0 0.0
        %681 = vmatpush2.msra.mxu0 0.0
        %682 = vmatprep.subr.mxu0 0.0
        %683 = vmatpush2.msra.mxu0 0.0
        %684 = vmatprep.subr.mxu0 0.0
        %685 = vmatpush2.msra.mxu0 0.0
        %686 = vmatprep.subr.mxu0 0.0
        %687 = vmatpush2.msra.mxu0 0.0
        %688 = vmatprep.subr.mxu0 0.0
        %689 = vmatpush2.msra.mxu0 0.0
        %690 = vmatprep.mubr.f32.mxu0 0.0
        %691 = vmatmul.mubr.f32.gmra.mxu0 %v624
        %v692 = vpop.f32.mrf.mxu0
        %v693 = vadd.f32 0.0, %v692
        %v694 = vpop.f32.mrf.mxu0
        %695 = vdwg.mxu0
        %v697 = vsel %vm622, %v508, 0
        %699 = vmatprep.subr.mxu0 0.0
        %700 = vmatpush1.msra.mxu0 0.0
        %701 = vmatprep.subr.mxu0 0.0
        %702 = vmatpush1.msra.mxu0 0.0
        %703 = vmatprep.subr.mxu0 0.0
        %704 = vmatpush1.msra.mxu0 0.0
        %705 = vmatprep.subr.mxu0 0.0
        %706 = vmatpush1.msra.mxu0 0.0
        %707 = vmatprep.subr.mxu0 0.0
        %708 = vmatpush1.msra.mxu0 0.0
        %709 = vmatprep.subr.mxu0 0.0
        %710 = vmatpush1.msra.mxu0 0.0
        %711 = vmatprep.subr.mxu0 0.0
        %712 = vmatpush1.msra.mxu0 0.0
        %713 = vmatprep.subr.mxu0 0.0
        %714 = vmatpush1.msra.mxu0 0.0
        %715 = vmatprep.subr.mxu0 0.0
        %716 = vmatpush1.msra.mxu0 0.0
        %717 = vmatprep.subr.mxu0 0.0
        %718 = vmatpush1.msra.mxu0 0.0
        %719 = vmatprep.subr.mxu0 0.0
        %720 = vmatpush1.msra.mxu0 0.0
        %721 = vmatprep.subr.mxu0 0.0
        %722 = vmatpush1.msra.mxu0 0.0
        %723 = vmatprep.subr.mxu0 0.0
        %724 = vmatpush1.msra.mxu0 %v617
        %725 = vmatprep.subr.mxu0 0.0
        %726 = vmatpush1.msra.mxu0 %v616
        %727 = vmatprep.subr.mxu0 0.0
        %728 = vmatpush1.msra.mxu0 %v615
        %729 = vmatprep.subr.mxu0 0.0
        %730 = vmatpush1.msra.mxu0 %v614
        %731 = vmatprep.subr.mxu0 0.0
        %732 = vmatpush2.msra.mxu0 0.0
        %733 = vmatprep.subr.mxu0 0.0
        %734 = vmatpush2.msra.mxu0 0.0
        %735 = vmatprep.subr.mxu0 0.0
        %736 = vmatpush2.msra.mxu0 0.0
        %737 = vmatprep.subr.mxu0 0.0
        %738 = vmatpush2.msra.mxu0 0.0
        %739 = vmatprep.subr.mxu0 0.0
        %740 = vmatpush2.msra.mxu0 0.0
        %741 = vmatprep.subr.mxu0 0.0
        %742 = vmatpush2.msra.mxu0 0.0
        %743 = vmatprep.subr.mxu0 0.0
        %744 = vmatpush2.msra.mxu0 0.0
        %745 = vmatprep.subr.mxu0 0.0
        %746 = vmatpush2.msra.mxu0 0.0
        %747 = vmatprep.subr.mxu0 0.0
        %748 = vmatpush2.msra.mxu0 0.0
        %749 = vmatprep.subr.mxu0 0.0
        %750 = vmatpush2.msra.mxu0 0.0
        %751 = vmatprep.subr.mxu0 0.0
        %752 = vmatpush2.msra.mxu0 0.0
        %753 = vmatprep.subr.mxu0 0.0
        %754 = vmatpush2.msra.mxu0 0.0
        %755 = vmatprep.subr.mxu0 0.0
        %756 = vmatpush2.msra.mxu0 0.0
        %757 = vmatprep.subr.mxu0 0.0
        %758 = vmatpush2.msra.mxu0 0.0
        %759 = vmatprep.subr.mxu0 0.0
        %760 = vmatpush2.msra.mxu0 0.0
        %761 = vmatprep.subr.mxu0 0.0
        %762 = vmatpush2.msra.mxu0 0.0
        %763 = vmatprep.mubr.f32.mxu0 0.0
        %764 = vmatmul.mubr.f32.gmra.mxu0 %v697
        %v765 = vpop.f32.mrf.mxu0
        %v766 = vadd.f32 %v693, %v765
        %v767 = vpop.f32.mrf.mxu0
        %768 = vdwg.mxu0
        %v769 = vtanh.pop %v766
        %v770 = vmul.f32 %v769, 1.442695
        %v771 = vpow.pop %v770
        %v772 = vmul.f32 %v771, %v771
        %v773 = vmul.f32 %v509, %v509
        %v774 = vsub.f32 %v509, %v769
        %v775 = vlog2.pop %v773
        %v776 = vmul.f32 %v775, 0.6931472
        %v777 = vmul.f32 %v769, 2.0
        %v778 = vsub.f32 %v776, %v777
        %v779 = vsub.f32 %v778, 1.0
        %v780 = vmul.f32 %v774, %v774
        %782 = vrot.lane.b32.xlu0 %v780, 32
        %v783 = vpop.permute.xlu0 %782
        %v785 = vadd.f32 %v772, %v783
        %v786 = vrcp.pop %v773
        %v787 = vmul.f32 %v785, %v786
        %v788 = vadd.f32 %v779, %v787
        %790 = vrot.lane.b32.xlu0 %v788, 96
        %v791 = vpop.permute.xlu0 %790
        %v793 = vsel %vm622, %v791, 0.0
        %794 = vadd.xlane.f32.xlu0 %v793
        %v795 = vpop.xlane.xlu0 %794
        %v796 = vrot.slane %v795, 4
        %v797 = vadd.f32 %v795, %v796
        %v798 = vrot.slane %v797, 2
        %v799 = vadd.f32 %v797, %v798
        %v800 = vrot.slane %v799, 1
        %v801 = vadd.f32 %v799, %v800
        %s802 = vtos %v801
        %s803 = smul.f32 %s802, 0.5
        %v804 = vld [vmem:[%s500] sm:$0xf]
        %v805 = vld [vmem:[%s500 + $0x4] sm:$0xf]
        %v806 = vld [vmem:[%s500 + $0x8] sm:$0xf]
        %v807 = vld [vmem:[%s500 + $0xc] sm:$0xf]
        %v808 = vld [vmem:[%s500 + $0x10] sm:$0xf]
        %v809 = vld [vmem:[%s500 + $0x14] sm:$0xf]
        %v810 = vld [vmem:[%s500 + $0x18] sm:$0xf]
        %v811 = vld [vmem:[%s500 + $0x1c] sm:$0xf]
        %v812 = vld [vmem:[%s500 + $0x20] sm:$0xf]
        %v813 = vld [vmem:[%s500 + $0x24] sm:$0xf]
        %v814 = vld [vmem:[%s500 + $0x28] sm:$0xf]
        %v815 = vld [vmem:[%s500 + $0x2c] sm:$0xf]
        %v816 = vld [vmem:[%s500 + $0x30] sm:$0xf]
        %v817 = vld [vmem:[%s500 + $0x34] sm:$0xf]
        %v818 = vld [vmem:[%s500 + $0x38] sm:$0xf]
        %v819 = vld [vmem:[%s500 + $0x3c] sm:$0xf]
        %v836 = vunpack.c.l.b16 %v804
        %v837 = vunpack.c.l.b16 %v805
        %v838 = vunpack.c.l.b16 %v806
        %v839 = vunpack.c.l.b16 %v807
        %v840 = vunpack.c.l.b16 %v808
        %v841 = vunpack.c.l.b16 %v809
        %v842 = vunpack.c.l.b16 %v810
        %v843 = vunpack.c.l.b16 %v811
        %v844 = vunpack.c.l.b16 %v812
        %v845 = vunpack.c.l.b16 %v813
        %v846 = vunpack.c.l.b16 %v814
        %v847 = vunpack.c.l.b16 %v815
        %v848 = vunpack.c.l.b16 %v816
        %v849 = vunpack.c.l.b16 %v817
        %v850 = vunpack.c.l.b16 %v818
        %v851 = vunpack.c.l.b16 %v819
        %v852 = vpack.c.b16 %v837, %v836
        %v853 = vpack.c.b16 %v839, %v838
        %v854 = vpack.c.b16 %v841, %v840
        %v855 = vpack.c.b16 %v843, %v842
        %v856 = vpack.c.b16 %v845, %v844
        %v857 = vpack.c.b16 %v847, %v846
        %v858 = vpack.c.b16 %v849, %v848
        %v859 = vpack.c.b16 %v851, %v850
        %868 = vmatprep.subr.bf16.mxu0 0
        %869 = vmatpush1.bf16.msra.mxu0 %v859
        %870 = vmatprep.subr.bf16.mxu0 0
        %871 = vmatpush1.bf16.msra.mxu0 %v858
        %872 = vmatprep.subr.bf16.mxu0 0
        %873 = vmatpush1.bf16.msra.mxu0 %v857
        %874 = vmatprep.subr.bf16.mxu0 0
        %875 = vmatpush1.bf16.msra.mxu0 %v856
        %876 = vmatprep.subr.bf16.mxu0 0
        %877 = vmatpush1.bf16.msra.mxu0 %v855
        %878 = vmatprep.subr.bf16.mxu0 0
        %879 = vmatpush1.bf16.msra.mxu0 %v854
        %880 = vmatprep.subr.bf16.mxu0 0
        %881 = vmatpush1.bf16.msra.mxu0 %v853
        %882 = vmatprep.subr.bf16.mxu0 0
        %883 = vmatpush1.bf16.msra.mxu0 %v852
        %884 = vmatprep.subr.bf16.mxu0 0
        %885 = vmatpush2.bf16.msra.mxu0 0
        %886 = vmatprep.subr.bf16.mxu0 0
        %887 = vmatpush2.bf16.msra.mxu0 0
        %888 = vmatprep.subr.bf16.mxu0 0
        %889 = vmatpush2.bf16.msra.mxu0 0
        %890 = vmatprep.subr.bf16.mxu0 0
        %891 = vmatpush2.bf16.msra.mxu0 0
        %892 = vmatprep.subr.bf16.mxu0 0
        %893 = vmatpush2.bf16.msra.mxu0 0
        %894 = vmatprep.subr.bf16.mxu0 0
        %895 = vmatpush2.bf16.msra.mxu0 0
        %896 = vmatprep.subr.bf16.mxu0 0
        %897 = vmatpush2.bf16.msra.mxu0 0
        %898 = vmatprep.subr.bf16.mxu0 0
        %899 = vmatpush2.bf16.msra.mxu0 0
        %900 = vmatprep.mubr.bf16.mxu0 0
        %901 = vmatmul.mubr.bf16.gmra.mxu0 %v507
        %v902 = vpop.f32.mrf.mxu0
        %v903 = vadd.f32 0.0, %v902
        %v904 = vpop.f32.mrf.mxu0
        %v905 = vpop.f32.mrf.mxu0
        %v906 = vpop.f32.mrf.mxu0
        %907 = vdwg.mxu0
        %v908 = vld [vmem:[%s505] sm:$0xf]
        %v909 = vld [vmem:[%s505 + $0x4] sm:$0xf]
        %v910 = vld [vmem:[%s505 + $0x8] sm:$0xf]
        %v911 = vld [vmem:[%s505 + $0xc] sm:$0xf]
        %v912 = vld [vmem:[%s505 + $0x10] sm:$0xf]
        %v913 = vld [vmem:[%s505 + $0x14] sm:$0xf]
        %v914 = vld [vmem:[%s505 + $0x18] sm:$0xf]
        %v915 = vld [vmem:[%s505 + $0x1c] sm:$0xf]
        %v916 = vld [vmem:[%s505 + $0x20] sm:$0xf]
        %v917 = vld [vmem:[%s505 + $0x24] sm:$0xf]
        %v918 = vld [vmem:[%s505 + $0x28] sm:$0xf]
        %v919 = vld [vmem:[%s505 + $0x2c] sm:$0xf]
        %v920 = vld [vmem:[%s505 + $0x30] sm:$0xf]
        %v921 = vld [vmem:[%s505 + $0x34] sm:$0xf]
        %v922 = vld [vmem:[%s505 + $0x38] sm:$0xf]
        %v923 = vld [vmem:[%s505 + $0x3c] sm:$0xf]
        %v940 = vunpack.c.l.b16 %v908
        %v941 = vunpack.c.l.b16 %v909
        %v942 = vunpack.c.l.b16 %v910
        %v943 = vunpack.c.l.b16 %v911
        %v944 = vunpack.c.l.b16 %v912
        %v945 = vunpack.c.l.b16 %v913
        %v946 = vunpack.c.l.b16 %v914
        %v947 = vunpack.c.l.b16 %v915
        %v948 = vunpack.c.l.b16 %v916
        %v949 = vunpack.c.l.b16 %v917
        %v950 = vunpack.c.l.b16 %v918
        %v951 = vunpack.c.l.b16 %v919
        %v952 = vunpack.c.l.b16 %v920
        %v953 = vunpack.c.l.b16 %v921
        %v954 = vunpack.c.l.b16 %v922
        %v955 = vunpack.c.l.b16 %v923
        %v956 = vpack.c.b16 %v941, %v940
        %v957 = vpack.c.b16 %v943, %v942
        %v958 = vpack.c.b16 %v945, %v944
        %v959 = vpack.c.b16 %v947, %v946
        %v960 = vpack.c.b16 %v949, %v948
        %v961 = vpack.c.b16 %v951, %v950
        %v962 = vpack.c.b16 %v953, %v952
        %v963 = vpack.c.b16 %v955, %v954
        %972 = vmatprep.subr.bf16.mxu0 0
        %973 = vmatpush1.bf16.msra.mxu0 %v963
        %974 = vmatprep.subr.bf16.mxu0 0
        %975 = vmatpush1.bf16.msra.mxu0 %v962
        %976 = vmatprep.subr.bf16.mxu0 0
        %977 = vmatpush1.bf16.msra.mxu0 %v961
        %978 = vmatprep.subr.bf16.mxu0 0
        %979 = vmatpush1.bf16.msra.mxu0 %v960
        %980 = vmatprep.subr.bf16.mxu0 0
        %981 = vmatpush1.bf16.msra.mxu0 %v959
        %982 = vmatprep.subr.bf16.mxu0 0
        %983 = vmatpush1.bf16.msra.mxu0 %v958
        %984 = vmatprep.subr.bf16.mxu0 0
        %985 = vmatpush1.bf16.msra.mxu0 %v957
        %986 = vmatprep.subr.bf16.mxu0 0
        %987 = vmatpush1.bf16.msra.mxu0 %v956
        %988 = vmatprep.subr.bf16.mxu0 0
        %989 = vmatpush2.bf16.msra.mxu0 0
        %990 = vmatprep.subr.bf16.mxu0 0
        %991 = vmatpush2.bf16.msra.mxu0 0
        %992 = vmatprep.subr.bf16.mxu0 0
        %993 = vmatpush2.bf16.msra.mxu0 0
        %994 = vmatprep.subr.bf16.mxu0 0
        %995 = vmatpush2.bf16.msra.mxu0 0
        %996 = vmatprep.subr.bf16.mxu0 0
        %997 = vmatpush2.bf16.msra.mxu0 0
        %998 = vmatprep.subr.bf16.mxu0 0
        %999 = vmatpush2.bf16.msra.mxu0 0
        %1000 = vmatprep.subr.bf16.mxu0 0
        %1001 = vmatpush2.bf16.msra.mxu0 0
        %1002 = vmatprep.subr.bf16.mxu0 0
        %1003 = vmatpush2.bf16.msra.mxu0 0
        %1004 = vmatprep.mubr.bf16.mxu0 0
        %1005 = vmatmul.mubr.bf16.gmra.mxu0 %v507
        %v1006 = vpop.f32.mrf.mxu0
        %v1007 = vadd.f32 0.0, %v1006
        %v1008 = vpop.f32.mrf.mxu0
        %v1009 = vpop.f32.mrf.mxu0
        %v1010 = vpop.f32.mrf.mxu0
        %1011 = vdwg.mxu0
        %v1012 = vld [vmem:[%s487] sm:$0xff]
        %v1013 = vmul.f32 %v1012, %v903
        %vm1014 = vcmask 130048
        %v1015 = vsel %vm1014, %v1013, 0.0
        %1016 = vadd.xlane.f32.xlu0 %v1015
        %v1017 = vpop.xlane.xlu0 %1016
        %v1018 = vld [vmem:[%s491] sm:$0xff]
        %v1019 = vmul.f32 %v1018, %v1007
        %vm1020 = vcmask 64512
        %v1021 = vsel %vm1020, %v1019, 0.0
        %1022 = vadd.xlane.f32.xlu0 %v1021
        %v1023 = vpop.xlane.xlu0 %1022
        %v1024 = vld [vmem:[%s495] sm:$0xff]
        %v1025 = vunpack.c.l.bf16 %v507
        %v1026 = vmul.f32 %v1024, %v1025
        %1027 = vadd.xlane.f32.xlu0 %v1026
        %v1028 = vpop.xlane.xlu0 %1027
        %1030 = vrot.lane.b32.xlu0 %v509, 96
        %v1031 = vpop.permute.xlu0 %1030
        %v1033 = vmul.f32 %v771, %v1031
        %1035 = vrot.lane.b32.xlu0 %v1033, 96
        %v1036 = vpop.permute.xlu0 %1035
        %v1038 = vadd.f32 %v769, %v1036
        %v1039 = vld [vmem:[%s10] sm:$0x7]
        %v1040 = vlaneseq
        %v1041 = vshrl.u32 %v1040, 7
        %v1042 = vsub.s32 0, %v1041
        %v1043 = vrot.slane %v1039, %v1042
        %v1044 = vmul.f32 %v1038, %v1043
        %v1045 = vsel %vm622, %v1044, 0.0
        %1046 = vadd.xlane.f32.xlu0 %v1045
        %v1047 = vpop.xlane.xlu0 %1046
        %v1048 = vadd.f32 %v1047, %v509
        %v1049 = vmul.f32 %v1048, 5.0
        %v1050 = vlaneseq
        %v1051 = vshrl.u32 %v1050, 7
        %v1052 = vsub.s32 1, %v1051
        %v1053 = vrot.slane %v1039, %v1052
        %v1054 = vmul.f32 %v1038, %v1053
        %v1055 = vsel %vm622, %v1054, 0.0
        %1056 = vadd.xlane.f32.xlu0 %v1055
        %v1057 = vpop.xlane.xlu0 %1056
        %v1058 = vadd.f32 %v1057, %v509
        %v1059 = vmul.f32 %v1058, 5.0
        %v1060 = vlaneseq
        %v1061 = vshrl.u32 %v1060, 7
        %v1062 = vsub.s32 2, %v1061
        %v1063 = vrot.slane %v1039, %v1062
        %v1064 = vmul.f32 %v1038, %v1063
        %v1065 = vsel %vm622, %v1064, 0.0
        %1066 = vadd.xlane.f32.xlu0 %v1065
        %v1067 = vpop.xlane.xlu0 %1066
        %v1068 = vadd.f32 %v1067, %v509
        %v1069 = vmul.f32 %v1068, 5.0
        %1071 = vrot.lane.b32.xlu0 %v1059, 127
        %v1072 = vpop.permute.xlu0 %1071
        %v1074 = vmax.f32 %v1049, %v1072
        %1076 = vrot.lane.b32.xlu0 %v1069, 126
        %v1077 = vpop.permute.xlu0 %1076
        %v1079 = vmax.f32 %v1074, %v1077
        %v1080 = vsub.f32 %v1049, %v1079
        %v1081 = vmul.f32 %v1080, 1.442695
        %v1082 = vpow.pop %v1081
        %1084 = vrot.lane.b32.xlu0 %v1079, 1
        %v1085 = vpop.permute.xlu0 %1084
        %v1087 = vsub.f32 %v1059, %v1085
        %v1088 = vmul.f32 %v1087, 1.442695
        %v1089 = vpow.pop %v1088
        %1090 = vrot.lane.b32.xlu0 %v1079, 2
        %v1091 = vpop.permute.xlu0 %1090
        %v1093 = vsub.f32 %v1069, %v1091
        %v1094 = vmul.f32 %v1093, 1.442695
        %v1095 = vpow.pop %v1094
        %v1096 = vmul.f32 %v1082, %v1023
        %v1097 = vmul.f32 %v1089, %v1017
        %1099 = vrot.lane.b32.xlu0 %v1097, 127
        %v1100 = vpop.permute.xlu0 %1099
        %v1102 = vadd.f32 %v1096, %v1100
        %v1103 = vmul.f32 %v1095, %v1028
        %1105 = vrot.lane.b32.xlu0 %v1103, 126
        %v1106 = vpop.permute.xlu0 %1105
        %v1108 = vadd.f32 %v1102, %v1106
        %1110 = vrot.lane.b32.xlu0 %v1089, 127
        %v1111 = vpop.permute.xlu0 %1110
        %v1113 = vadd.f32 %v1082, %v1111
        %1115 = vrot.lane.b32.xlu0 %v1095, 126
        %v1116 = vpop.permute.xlu0 %1115
        %v1118 = vadd.f32 %v1113, %v1116
        %v1119 = vlog2.pop %v1108
        %v1120 = vmul.f32 %v1119, 0.6931472
        %v1121 = vlog2.pop %v1118
        %v1122 = vmul.f32 %v1121, 0.6931472
        %v1123 = vsub.f32 %v1120, %v1122
        %1125 = vrot.lane.b32.xlu0 %v1123, 32
        %v1126 = vpop.permute.xlu0 %1125
        %vm1128 = vcmask 7168
        %v1129 = vsel %vm1128, %v1126, 0.0
        %1130 = vadd.xlane.f32.xlu0 %v1129
        %v1131 = vpop.xlane.xlu0 %1130
        %v1132 = vrot.slane %v1131, 4
        %v1133 = vadd.f32 %v1131, %v1132
        %v1134 = vrot.slane %v1133, 2
        %v1135 = vadd.f32 %v1133, %v1134
        %v1136 = vrot.slane %v1135, 1
        %v1137 = vadd.f32 %v1135, %v1136
        %s1138 = vtos %v1137
        %s1139 = ssub.f32 %s1138, %s803
        %v1140 = vstv %s1139
        %1141 = vst [vmem:[%s471] sm:$0x1] %v1140
        %s1142 = sand.u32 %s304, 1
        %s1143 = scalar_lea.sflag [#allocation3], %s1142
        %s1144 = sand.u32 %s304, 1
        %s1145 = scalar_lea.vmem [#allocation2], %s1144
        // Predicated region
        $region65: #{tpu_custom_call.1} parent=63 // pred_check
          %p1146 = pneg %p314
        $region66: #{tpu_custom_call.1} parent=63 // pred_check_branch
          %1148 = sbr.rel (%p1146) target = $region68
        $region67: #{tpu_custom_call.1} parent=63 // pred_region
          %s1150 = ssub.s32 16, 16
          %1151 = vsyncadd %s1143, %s1150
          %s1152 = smul.addr %s25, 16
          %s1153 = scalar_lea.hbm %s11, %s1152
          %s1155 = sshll.u32 %s1145, 4
          %s1156 = int_to_ptr.vmem [resolvable:$true] %s1155
          %1158 = dma.vmem_to_hbm [thread:$0]  %s1156, 16, %s1153, %s1143
        $region68: #{tpu_custom_call.1} parent=63 // pred_fallthru
          _
      $region64: #{tpu_custom_call.1} parent=5 // pred_fallthru
        _
      %p1159 = scmp.le.s32.totalorder 2, %s20
      // Predicated region
      $region69: #{tpu_custom_call.1} parent=5 // pred_check
        %p1160 = pneg %p1159
      $region70: #{tpu_custom_call.1} parent=5 // pred_check_branch
        %1162 = sbr.rel (%p1160) target = $region72
      $region71: #{tpu_custom_call.1} parent=5 // pred_region
        %s1163 = ssub.s32 %s20, 2
        // Predicated region
        $region73: #{tpu_custom_call.1} parent=71 // pred_check
          %p1164 = pneg %p320
        $region74: #{tpu_custom_call.1} parent=71 // pred_check_branch
          %1166 = sbr.rel (%p1164) target = $region76
        $region75: #{tpu_custom_call.1} parent=71 // pred_region
          %s1167 = sand.u32 %s305, 1
          %s1168 = scalar_lea.sflag [#allocation3], %s1167
          %s1169 = sand.u32 %s305, 1
          %s1170 = scalar_lea.vmem [#allocation2], %s1169
          %1171 = dma.done %s1168, 16
        $region76: #{tpu_custom_call.1} parent=71 // pred_fallthru
          _
      $region72: #{tpu_custom_call.1} parent=5 // pred_fallthru
        _
    $region6: #{tpu_custom_call.1} parent=1 // loop_footer
      %s24 = sadd.s32 1, %s20
    $region7: #{tpu_custom_call.1} parent=1 // loop_footer_branch
      %19 = sbr.rel target = $region3
    $region8: #{tpu_custom_call.1} parent=1 // loop_exit
      _
    %1172 = vsyncpa [#allocation3], 1
    %s1173 = scalar_lea.sflag [#allocation3], 1
    %1174 = vsyncpa %s1173, 1

</llo_original>
